<compile_context>
chip_gen: v7x
topology: tpu7x:2x2x1
jax: 0.10.0
libtpu: 0.0.40
codegen_flags: <defaults>
</compile_context>

<pallas_src>
import functools

import jax
import jax.numpy as jnp
from jax.experimental import pallas as pl
from jax.experimental.pallas import tpu as pltpu


def _hardswish(x):
    # PyTorch nn.Hardswish: x * relu6(x + 3) / 6
    return x * jnp.clip(x + 3.0, 0.0, 6.0) * (1.0 / 6.0)


def bottleneck_kernel(x_ref, w1_ref, b1_ref, w2_ref, b2_ref, mask_ref, o_ref,
                      *, shifts, add, accum_taps, mm_dtype):
    # x_ref   : (Cin, L)         L = block_n * H*W, pixels (batch-folded) on lanes
    # w1_ref  : (Chp, Cin)       folded 1x1 conv+BN weight (Chid zero-padded to Chp)
    # b1_ref  : (Chp, 1)         folded BN bias
    # w2_ref  : (Cout, 9*Chp)    folded 3x3 conv+BN weight, tap-major columns
    # b2_ref  : (Cout, 1)        folded BN bias
    # mask_ref: (9, L)           precomputed 0/1 per-tap validity masks (f32)
    # o_ref   : (Cout, L)
    Chp = w1_ref.shape[0]

    x2d = x_ref[...].astype(jnp.float32)                              # (Cin, L)

    # ---- conv1: 1x1 conv == one channel matmul over all L lanes ----
    h1 = jnp.dot(w1_ref[...], x2d.astype(mm_dtype),
                 preferred_element_type=jnp.float32)                  # (Chp, L)
    h1 = _hardswish(h1 + b1_ref[...])          # padded hidden rows stay exactly 0

    # ---- conv2: 3x3 taps via lane rolls (XLU) * resident masks (VPU) ----
    def tap(t):
        return mask_ref[t:t + 1, :] * pltpu.roll(h1, shift=shifts[t], axis=1)

    if accum_taps:
        # Large-Chp path: 9 accumulating matmuls, no 9x im2col buffer in VMEM.
        w2 = w2_ref[...]
        y = jnp.zeros(o_ref.shape, jnp.float32)
        for t in range(9):
            y = y + jnp.dot(w2[:, t * Chp:(t + 1) * Chp],
                            tap(t).astype(mm_dtype),
                            preferred_element_type=jnp.float32)
    else:
        # Small-Chp path: one fused matmul with K = 9*Chp.
        patches = jnp.concatenate([tap(t) for t in range(9)], axis=0)  # (9*Chp, L)
        y = jnp.dot(w2_ref[...], patches.astype(mm_dtype),
                    preferred_element_type=jnp.float32)                # (Cout, L)

    y = _hardswish(y + b2_ref[...])
    if add:                                            # static python bool
        y = y + x2d

    o_ref[...] = y.astype(o_ref.dtype)                 # unmasked full-lane store


def bottleneck_std_pallas(x_nchw, w1, b1, w2, b2, *, add, block_n=None,
                          mm_dtype=jnp.float32):
    """x_nchw: (N, Cin, H, W) NCHW (PyTorch layout).
       w1: (Chid, Cin) folded 1x1 weight, b1: (Chid,),
       w2: (Cout, Chid, 3, 3) OIHW folded 3x3 weight, b2: (Cout,).
       Returns NCHW (N, Cout, H, W)."""
    N, Cin, H, W = x_nchw.shape
    Chid = w1.shape[0]
    Cout = w2.shape[0]
    P = H * W

    # Pad hidden channels to a sublane multiple (8) so the tap concatenation /
    # tap slicing is aligned; padded rows/columns are zero and contribute nothing
    # (relies on hardswish(0) == 0 and zero padded bias).
    Chp = ((Chid + 7) // 8) * 8
    w1p = jnp.zeros((Chp, Cin), jnp.float32).at[:Chid].set(w1.astype(jnp.float32))
    b1p = jnp.zeros((Chp, 1), jnp.float32).at[:Chid, 0].set(b1.astype(jnp.float32))
    w2t = jnp.transpose(w2.astype(jnp.float32), (0, 2, 3, 1))      # (Cout, 3, 3, Chid)
    w2p = jnp.zeros((Cout, 3, 3, Chp), jnp.float32).at[:, :, :, :Chid].set(w2t)
    w2m = w2p.reshape(Cout, 9 * Chp)                               # tap-major columns
    b2c = b2.astype(jnp.float32).reshape(Cout, 1)

    # bf16 MXU inputs are the right default at realistic channel counts on
    # v6e/v7x; at the demo size it is numerics-only so f32 is the default.
    w1p = w1p.astype(mm_dtype)
    w2m = w2m.astype(mm_dtype)

    # Images per grid step.  Cap at N//2 so there are >= 2 grid steps and the
    # "parallel" axis can be sharded across the 2 TensorCores on v7x.
    if block_n is None:
        cap = max(1, N // 2)
        block_n = max(d for d in range(1, cap + 1) if N % d == 0)
    assert N % block_n == 0
    L = block_n * P

    # Use per-tap accumulation (flat VMEM) once the hidden width fills the MXU.
    accum_taps = Chp >= 128

    # Per-tap validity masks + lane-roll amounts (padding = 1), tiled per image.
    pix = jnp.arange(P, dtype=jnp.int32)
    row = pix // W
    col = pix - row * W
    masks, shifts = [], []
    for kh in range(3):
        dy = kh - 1
        for kw in range(3):
            dx = kw - 1
            valid = ((row + dy >= 0) & (row + dy < H) &
                     (col + dx >= 0) & (col + dx < W))
            masks.append(valid.astype(jnp.float32))
            # roll so that result[p] = h1[p + dy*W + dx]; invalid lanes masked to 0.
            shifts.append((-(dy * W + dx)) % L)
    mask9 = jnp.tile(jnp.stack(masks, axis=0), (1, block_n))        # (9, L)
    shifts = tuple(shifts)

    # Batch-folded, lane-dense relayout: (N, Cin, H, W) -> (Cin, N*P).
    x_cl = x_nchw.reshape(N, Cin, P).transpose(1, 0, 2).reshape(Cin, N * P)

    # Explicit scoped-VMEM budget for the chosen block sizes (defaults are only
    # 16 MiB on v5e / 32 MiB on v6e+), capped at v7x's 64 MiB physical VMEM.
    f32b = 4
    est = 2 * f32b * (Cin + Cout) * L                               # x/out blocks (x2 buf)
    est += 2 * f32b * (Chp * Cin + Chp + Cout * 9 * Chp + Cout + 9 * L)  # params + masks
    est += f32b * (Chp + Cout) * L                                  # h1, y temporaries
    if not accum_taps:
        est += f32b * 9 * Chp * L                                   # im2col patches
    vmem_limit = int(min(64 * 1024 * 1024, max(2 * est, 32 * 1024 * 1024)))

    out_cl = pl.pallas_call(
        functools.partial(bottleneck_kernel, shifts=shifts, add=add,
                          accum_taps=accum_taps, mm_dtype=mm_dtype),
        out_shape=jax.ShapeDtypeStruct((Cout, N * P), x_nchw.dtype),
        grid_spec=pltpu.PrefetchScalarGridSpec(
            num_scalar_prefetch=0,
            grid=(N // block_n,),
            in_specs=[
                pl.BlockSpec((Cin, L), lambda b: (0, b)),
                pl.BlockSpec((Chp, Cin), lambda b: (0, 0)),
                pl.BlockSpec((Chp, 1), lambda b: (0, 0)),
                pl.BlockSpec((Cout, 9 * Chp), lambda b: (0, 0)),
                pl.BlockSpec((Cout, 1), lambda b: (0, 0)),
                pl.BlockSpec((9, L), lambda b: (0, 0)),
            ],
            out_specs=pl.BlockSpec((Cout, L), lambda b: (0, b)),
        ),
        compiler_params=pltpu.CompilerParams(
            dimension_semantics=("parallel",),       # batch blocks are independent
            vmem_limit_bytes=vmem_limit),
    )(x_cl, w1p, b1p, w2m, b2c, mask9)

    # Free-ish relayout back to NCHW.
    return out_cl.reshape(Cout, N, P).transpose(1, 0, 2).reshape(N, Cout, H, W)


def _fold_bn(w_oihw, gamma, beta, mean, var, eps):
    """Fold BatchNorm (inference) into a bias-less conv: returns (w', b)."""
    scale = gamma / jnp.sqrt(var + eps)
    w_folded = w_oihw * scale[:, None, None, None]
    bias = beta - mean * scale
    return w_folded, bias


def _reference_forward(x_nchw, w1_oihw, b1, w2_oihw, b2, add):
    dn = ('NCHW', 'OIHW', 'NCHW')
    y = jax.lax.conv_general_dilated(x_nchw, w1_oihw, (1, 1), 'VALID',
                                     dimension_numbers=dn)
    y = _hardswish(y + b1[None, :, None, None])
    y = jax.lax.conv_general_dilated(y, w2_oihw, (1, 1), ((1, 1), (1, 1)),
                                     dimension_numbers=dn)
    y = _hardswish(y + b2[None, :, None, None])
    return x_nchw + y if add else y


if __name__ == "__main__":
    # Module hyper-params (small, consistent with BottleneckStd defaults)
    in_planes, out_planes = 8, 8
    expansion, eps = 0.5, 1e-5
    shortcut, groups = True, 1
    hidden_planes = int(out_planes * expansion)          # 4
    add = shortcut and (in_planes == out_planes)

    N, H, W = 2, 16, 16

    key = jax.random.PRNGKey(0)
    ks = jax.random.split(key, 11)

    # Deterministic synthetic parameters (PyTorch layouts), then fold BN.
    w1_raw = 0.1 * jax.random.normal(ks[0], (hidden_planes, in_planes, 1, 1), jnp.float32)
    g1 = 1.0 + 0.1 * jax.random.normal(ks[1], (hidden_planes,), jnp.float32)
    be1 = 0.1 * jax.random.normal(ks[2], (hidden_planes,), jnp.float32)
    m1 = 0.1 * jax.random.normal(ks[3], (hidden_planes,), jnp.float32)
    v1 = jax.random.uniform(ks[4], (hidden_planes,), jnp.float32, 0.5, 1.5)

    w2_raw = 0.1 * jax.random.normal(ks[5], (out_planes, hidden_planes, 3, 3), jnp.float32)
    g2 = 1.0 + 0.1 * jax.random.normal(ks[6], (out_planes,), jnp.float32)
    be2 = 0.1 * jax.random.normal(ks[7], (out_planes,), jnp.float32)
    m2 = 0.1 * jax.random.normal(ks[8], (out_planes,), jnp.float32)
    v2 = jax.random.uniform(ks[9], (out_planes,), jnp.float32, 0.5, 1.5)

    w1_f, b1_f = _fold_bn(w1_raw, g1, be1, m1, v1, eps)   # (Chid, Cin, 1, 1), (Chid,)
    w2_f, b2_f = _fold_bn(w2_raw, g2, be2, m2, v2, eps)   # (Cout, Chid, 3, 3), (Cout,)

    # Kernel-layout params (PyTorch-layout folded weights; wrapper does the packing).
    w1_k = w1_f[:, :, 0, 0]                               # (Chid, Cin)
    b1_k = b1_f                                           # (Chid,)
    w2_k = w2_f                                           # (Cout, Chid, 3, 3) OIHW
    b2_k = b2_f                                           # (Cout,)

    # Input (NCHW, as PyTorch).
    x = jax.random.normal(ks[10], (N, in_planes, H, W), jnp.float32)

    out = bottleneck_std_pallas(x, w1_k, b1_k, w2_k, b2_k, add=add)
    out = jax.block_until_ready(out)

    ref = _reference_forward(x, w1_f, b1_f, w2_f, b2_f, add)
    assert out.shape == (N, out_planes, H, W)
    assert jnp.allclose(out, ref, atol=2e-4, rtol=2e-4), \
        f"max abs err {jnp.max(jnp.abs(out - ref))}"

    print("KERNEL_OK")
</pallas_src>

<mosaic_0001>
module attributes {stable_mosaic.version = 11 : i64} {
  func.func @bottleneck_kernel(%arg0: i32, %arg1: memref<8x256xf32, #tpu.memory_space<vmem>>, %arg2: memref<8x8xf32, #tpu.memory_space<vmem>>, %arg3: memref<8x1xf32, #tpu.memory_space<vmem>>, %arg4: memref<8x72xf32, #tpu.memory_space<vmem>>, %arg5: memref<8x1xf32, #tpu.memory_space<vmem>>, %arg6: memref<9x256xf32, #tpu.memory_space<vmem>>, %arg7: memref<8x256xf32, #tpu.memory_space<vmem>>) attributes {dimension_semantics = [#tpu.dimension_semantics<parallel>], iteration_bounds = array<i64: 2>, scalar_prefetch = 0 : i64, scratch_operands = 0 : i64, tpu.core_type = #tpu.core_type<tc>, window_params = [{transform_indices = @transform_0, window_bounds = array<i64: 8, 256>}, {pipeline_mode = #tpu.pipeline_mode<synchronous>, transform_indices = @transform_1, window_bounds = array<i64: 8, 8>}, {pipeline_mode = #tpu.pipeline_mode<synchronous>, transform_indices = @transform_2, window_bounds = array<i64: 8, 1>}, {pipeline_mode = #tpu.pipeline_mode<synchronous>, transform_indices = @transform_3, window_bounds = array<i64: 8, 72>}, {pipeline_mode = #tpu.pipeline_mode<synchronous>, transform_indices = @transform_4, window_bounds = array<i64: 8, 1>}, {pipeline_mode = #tpu.pipeline_mode<synchronous>, transform_indices = @transform_5, window_bounds = array<i64: 9, 256>}, {transform_indices = @transform_6, window_bounds = array<i64: 8, 256>}]} {
    %c0 = arith.constant 0 : index
    %c0_0 = arith.constant 0 : index
    %0 = vector.load %arg1[%c0, %c0_0] : memref<8x256xf32, #tpu.memory_space<vmem>>, vector<8x256xf32>
    %c0_1 = arith.constant 0 : index
    %c0_2 = arith.constant 0 : index
    %1 = vector.load %arg2[%c0_1, %c0_2] : memref<8x8xf32, #tpu.memory_space<vmem>>, vector<8x8xf32>
    %cst = arith.constant dense<0.000000e+00> : vector<8x256xf32>
    %2 = tpu.matmul %1, %0, %cst {dimension_numbers = #tpu.dot_dimension_numbers<[1], [0], [0], [1], [0, 0, 1, 1], [], []>} : vector<8x8xf32>, vector<8x256xf32>, vector<8x256xf32> -> vector<8x256xf32>
    %c0_3 = arith.constant 0 : index
    %c0_4 = arith.constant 0 : index
    %3 = vector.load %arg3[%c0_3, %c0_4] : memref<8x1xf32, #tpu.memory_space<vmem>>, vector<8x1xf32>
    %4 = vector.broadcast %3 : vector<8x1xf32> to vector<8x256xf32>
    %5 = arith.addf %2, %4 : vector<8x256xf32>
    %cst_5 = arith.constant 3.000000e+00 : f32
    %6 = vector.broadcast %cst_5 : f32 to vector<8x256xf32>
    %7 = arith.addf %5, %6 : vector<8x256xf32>
    %cst_6 = arith.constant 0.000000e+00 : f32
    %cst_7 = arith.constant 6.000000e+00 : f32
    %8 = vector.broadcast %cst_6 : f32 to vector<8x256xf32>
    %9 = arith.maximumf %8, %7 : vector<8x256xf32>
    %10 = vector.broadcast %cst_7 : f32 to vector<8x256xf32>
    %11 = arith.minimumf %10, %9 : vector<8x256xf32>
    %12 = arith.mulf %5, %11 : vector<8x256xf32>
    %cst_8 = arith.constant 0.166666672 : f32
    %13 = vector.broadcast %cst_8 : f32 to vector<8x256xf32>
    %14 = arith.mulf %12, %13 : vector<8x256xf32>
    %c0_9 = arith.constant 0 : index
    %c0_10 = arith.constant 0 : index
    %15 = vector.load %arg6[%c0_9, %c0_10] : memref<9x256xf32, #tpu.memory_space<vmem>>, vector<1x256xf32>
    %c17_i32 = arith.constant 17 : i32
    %16 = tpu.dynamic_rotate %14 by %c17_i32 dim 1 : vector<8x256xf32>, i32 -> vector<8x256xf32>
    %17 = vector.broadcast %15 : vector<1x256xf32> to vector<8x256xf32>
    %18 = arith.mulf %17, %16 : vector<8x256xf32>
    %c1 = arith.constant 1 : index
    %c0_11 = arith.constant 0 : index
    %19 = vector.load %arg6[%c1, %c0_11] : memref<9x256xf32, #tpu.memory_space<vmem>>, vector<1x256xf32>
    %c16_i32 = arith.constant 16 : i32
    %20 = tpu.dynamic_rotate %14 by %c16_i32 dim 1 : vector<8x256xf32>, i32 -> vector<8x256xf32>
    %21 = vector.broadcast %19 : vector<1x256xf32> to vector<8x256xf32>
    %22 = arith.mulf %21, %20 : vector<8x256xf32>
    %c2 = arith.constant 2 : index
    %c0_12 = arith.constant 0 : index
    %23 = vector.load %arg6[%c2, %c0_12] : memref<9x256xf32, #tpu.memory_space<vmem>>, vector<1x256xf32>
    %c15_i32 = arith.constant 15 : i32
    %24 = tpu.dynamic_rotate %14 by %c15_i32 dim 1 : vector<8x256xf32>, i32 -> vector<8x256xf32>
    %25 = vector.broadcast %23 : vector<1x256xf32> to vector<8x256xf32>
    %26 = arith.mulf %25, %24 : vector<8x256xf32>
    %c3 = arith.constant 3 : index
    %c0_13 = arith.constant 0 : index
    %27 = vector.load %arg6[%c3, %c0_13] : memref<9x256xf32, #tpu.memory_space<vmem>>, vector<1x256xf32>
    %c1_i32 = arith.constant 1 : i32
    %28 = tpu.dynamic_rotate %14 by %c1_i32 dim 1 : vector<8x256xf32>, i32 -> vector<8x256xf32>
    %29 = vector.broadcast %27 : vector<1x256xf32> to vector<8x256xf32>
    %30 = arith.mulf %29, %28 : vector<8x256xf32>
    %c4 = arith.constant 4 : index
    %c0_14 = arith.constant 0 : index
    %31 = vector.load %arg6[%c4, %c0_14] : memref<9x256xf32, #tpu.memory_space<vmem>>, vector<1x256xf32>
    %c0_i32 = arith.constant 0 : i32
    %32 = tpu.dynamic_rotate %14 by %c0_i32 dim 1 : vector<8x256xf32>, i32 -> vector<8x256xf32>
    %33 = vector.broadcast %31 : vector<1x256xf32> to vector<8x256xf32>
    %34 = arith.mulf %33, %32 : vector<8x256xf32>
    %c5 = arith.constant 5 : index
    %c0_15 = arith.constant 0 : index
    %35 = vector.load %arg6[%c5, %c0_15] : memref<9x256xf32, #tpu.memory_space<vmem>>, vector<1x256xf32>
    %c255_i32 = arith.constant 255 : i32
    %36 = tpu.dynamic_rotate %14 by %c255_i32 dim 1 : vector<8x256xf32>, i32 -> vector<8x256xf32>
    %37 = vector.broadcast %35 : vector<1x256xf32> to vector<8x256xf32>
    %38 = arith.mulf %37, %36 : vector<8x256xf32>
    %c6 = arith.constant 6 : index
    %c0_16 = arith.constant 0 : index
    %39 = vector.load %arg6[%c6, %c0_16] : memref<9x256xf32, #tpu.memory_space<vmem>>, vector<1x256xf32>
    %c241_i32 = arith.constant 241 : i32
    %40 = tpu.dynamic_rotate %14 by %c241_i32 dim 1 : vector<8x256xf32>, i32 -> vector<8x256xf32>
    %41 = vector.broadcast %39 : vector<1x256xf32> to vector<8x256xf32>
    %42 = arith.mulf %41, %40 : vector<8x256xf32>
    %c7 = arith.constant 7 : index
    %c0_17 = arith.constant 0 : index
    %43 = vector.load %arg6[%c7, %c0_17] : memref<9x256xf32, #tpu.memory_space<vmem>>, vector<1x256xf32>
    %c240_i32 = arith.constant 240 : i32
    %44 = tpu.dynamic_rotate %14 by %c240_i32 dim 1 : vector<8x256xf32>, i32 -> vector<8x256xf32>
    %45 = vector.broadcast %43 : vector<1x256xf32> to vector<8x256xf32>
    %46 = arith.mulf %45, %44 : vector<8x256xf32>
    %c8 = arith.constant 8 : index
    %c0_18 = arith.constant 0 : index
    %47 = vector.load %arg6[%c8, %c0_18] : memref<9x256xf32, #tpu.memory_space<vmem>>, vector<1x256xf32>
    %c239_i32 = arith.constant 239 : i32
    %48 = tpu.dynamic_rotate %14 by %c239_i32 dim 1 : vector<8x256xf32>, i32 -> vector<8x256xf32>
    %49 = vector.broadcast %47 : vector<1x256xf32> to vector<8x256xf32>
    %50 = arith.mulf %49, %48 : vector<8x256xf32>
    %51 = tpu.concatenate %18, %22, %26, %30, %34, %38, %42, %46, %50 in 0 : vector<8x256xf32>, vector<8x256xf32>, vector<8x256xf32>, vector<8x256xf32>, vector<8x256xf32>, vector<8x256xf32>, vector<8x256xf32>, vector<8x256xf32>, vector<8x256xf32> -> vector<72x256xf32>
    %c0_19 = arith.constant 0 : index
    %c0_20 = arith.constant 0 : index
    %52 = vector.load %arg4[%c0_19, %c0_20] : memref<8x72xf32, #tpu.memory_space<vmem>>, vector<8x72xf32>
    %cst_21 = arith.constant dense<0.000000e+00> : vector<8x256xf32>
    %53 = tpu.matmul %52, %51, %cst_21 {dimension_numbers = #tpu.dot_dimension_numbers<[1], [0], [0], [1], [0, 0, 1, 1], [], []>} : vector<8x72xf32>, vector<72x256xf32>, vector<8x256xf32> -> vector<8x256xf32>
    %c0_22 = arith.constant 0 : index
    %c0_23 = arith.constant 0 : index
    %54 = vector.load %arg5[%c0_22, %c0_23] : memref<8x1xf32, #tpu.memory_space<vmem>>, vector<8x1xf32>
    %55 = vector.broadcast %54 : vector<8x1xf32> to vector<8x256xf32>
    %56 = arith.addf %53, %55 : vector<8x256xf32>
    %cst_24 = arith.constant 3.000000e+00 : f32
    %57 = vector.broadcast %cst_24 : f32 to vector<8x256xf32>
    %58 = arith.addf %56, %57 : vector<8x256xf32>
    %cst_25 = arith.constant 0.000000e+00 : f32
    %cst_26 = arith.constant 6.000000e+00 : f32
    %59 = vector.broadcast %cst_25 : f32 to vector<8x256xf32>
    %60 = arith.maximumf %59, %58 : vector<8x256xf32>
    %61 = vector.broadcast %cst_26 : f32 to vector<8x256xf32>
    %62 = arith.minimumf %61, %60 : vector<8x256xf32>
    %63 = arith.mulf %56, %62 : vector<8x256xf32>
    %cst_27 = arith.constant 0.166666672 : f32
    %64 = vector.broadcast %cst_27 : f32 to vector<8x256xf32>
    %65 = arith.mulf %63, %64 : vector<8x256xf32>
    %66 = arith.addf %65, %0 : vector<8x256xf32>
    %c0_28 = arith.constant 0 : index
    %c0_29 = arith.constant 0 : index
    %67 = vector.load %arg7[%c0_28, %c0_29] : memref<8x256xf32, #tpu.memory_space<vmem>>, vector<8x256xf32>
    tpu.vector_store %arg7[%c0_28, %c0_29], %66 {strides = array<i32>} : memref<8x256xf32, #tpu.memory_space<vmem>>, vector<8x256xf32>,
    return
  }
  func.func @transform_0(%arg0: i32) -> (i32, i32) {
    %c0_i32 = arith.constant 0 : i32
    %c0_i32_0 = arith.constant 0 : i32
    return %c0_i32, %arg0 : i32, i32
  }
  func.func @transform_1(%arg0: i32) -> (i32, i32) {
    %c0_i32 = arith.constant 0 : i32
    %c0_i32_0 = arith.constant 0 : i32
    %c0_i32_1 = arith.constant 0 : i32
    return %c0_i32, %c0_i32_0 : i32, i32
  }
  func.func @transform_2(%arg0: i32) -> (i32, i32) {
    %c0_i32 = arith.constant 0 : i32
    %c0_i32_0 = arith.constant 0 : i32
    %c0_i32_1 = arith.constant 0 : i32
    return %c0_i32, %c0_i32_0 : i32, i32
  }
  func.func @transform_3(%arg0: i32) -> (i32, i32) {
    %c0_i32 = arith.constant 0 : i32
    %c0_i32_0 = arith.constant 0 : i32
    %c0_i32_1 = arith.constant 0 : i32
    return %c0_i32, %c0_i32_0 : i32, i32
  }
  func.func @transform_4(%arg0: i32) -> (i32, i32) {
    %c0_i32 = arith.constant 0 : i32
    %c0_i32_0 = arith.constant 0 : i32
    %c0_i32_1 = arith.constant 0 : i32
    return %c0_i32, %c0_i32_0 : i32, i32
  }
  func.func @transform_5(%arg0: i32) -> (i32, i32) {
    %c0_i32 = arith.constant 0 : i32
    %c0_i32_0 = arith.constant 0 : i32
    %c0_i32_1 = arith.constant 0 : i32
    return %c0_i32, %c0_i32_0 : i32, i32
  }
  func.func @transform_6(%arg0: i32) -> (i32, i32) {
    %c0_i32 = arith.constant 0 : i32
    %c0_i32_0 = arith.constant 0 : i32
    return %c0_i32, %arg0 : i32, i32
  }
}

</mosaic_0001>

<llo_original>
// kernel: tpu_custom_call.1
$region0: #{tpu_custom_call.1}
  #allocation0 [shape = 'u32[]', space=smem, size = 0x4, offset = 0x4, fixed_abs, tag = 'smem constant byte address 0x4 - core index']
  #allocation1 [shape = 'u32[144,128]{1,0:T(1,128)}', space=vmem, size = 0x12000, scoped, tag = 'internal scratch']
  %s0 = inlined_call_operand.hbm [shape: f32[8,512], index: 0, kind: input, shape index: {}]
  %s1 = inlined_call_operand.hbm [shape: f32[8,8], index: 1, kind: input, shape index: {}]
  %s2 = inlined_call_operand.vmem [shape: f32[8,1], index: 2, kind: input, shape index: {}]
  %s3 = inlined_call_operand.hbm [shape: f32[8,72], index: 3, kind: input, shape index: {}]
  %s4 = inlined_call_operand.vmem [shape: f32[8,1], index: 4, kind: input, shape index: {}]
  %s5 = inlined_call_operand.vmem [shape: f32[9,256], index: 5, kind: input, shape index: {}]
  %s6 = inlined_call_operand.hbm [shape: f32[8,512], index: 6, kind: output, shape index: {}]
  %s7 = sld [smem:[#allocation0]]
  $region69: #{tpu_custom_call.1} parent=0
    _
  %s9 = ssub.s32 1, %s7
  %s10 = scalar_select 0, %s9, %s7
  $region1: #{tpu_custom_call.1} parent=0
    #allocation2 [shape = 'u8[16384]{0}', space=vmem, size = 0x4000, scoped, tag = 'input window, operand 0']
    #allocation3 [shape = 's32[2]{0}', space=sflag, size = 0x8, scoped, tag = 'scoped memory for tpu_custom_call.1']
    #allocation4 [shape = 's32[2]{0}', space=sflag, size = 0x8, scoped, tag = 'scoped memory for tpu_custom_call.1']
    #allocation5 [shape = 'u8[4096]{0}', space=vmem, size = 0x1000, scoped, tag = 'input window, operand 1, single buffered']
    #allocation6 [shape = 's32[1]{0}', space=sflag, size = 0x4, scoped, tag = 'scoped memory for tpu_custom_call.1']
    #allocation7 [shape = 'u8[4096]{0}', space=vmem, size = 0x1000, scoped, tag = 'input window, operand 3, single buffered']
    #allocation8 [shape = 'u8[16384]{0}', space=vmem, size = 0x4000, scoped, tag = 'output window, operand 0']
    %11 = vsyncpa [#allocation3], 0
    %s12 = scalar_lea.sflag [#allocation3], 1
    %13 = vsyncpa %s12, 0
    %14 = vsyncpa [#allocation6], 0
    %15 = vsyncpa [#allocation4], 0
    %s16 = scalar_lea.sflag [#allocation4], 1
    %17 = vsyncpa %s16, 0
    loop: start=0, step=1, limit=4
    $region2: #{tpu_custom_call.1} parent=1 // loop_pre_header
      _
    $region3: #{tpu_custom_call.1} parent=1 // loop_header
      %s19 = sphi 0, %s23
      %p20 = scmp.ge.s32.totalorder %s19, 4
      %s29 = sphi 0, %s31
      %s32 = sphi 0, %s29
      %s33 = sphi 0, %s32
      %s49 = sphi 0, %s33
      %s53 = sphi 0, %s53
      %s55 = sphi 0, %s53
      %s56 = sphi 0, %s55
      %s70 = sphi 0, %s56
      %s74 = sphi 0, %s74
      %s76 = sphi 0, %s74
      %s77 = sphi 0, %s76
      %s91 = sphi 0, %s77
      %s95 = sphi 0, %s95
      %s97 = sphi 0, %s95
      %s98 = sphi 0, %s97
      %s112 = sphi 0, %s98
      %s116 = sphi 0, %s116
      %s118 = sphi 0, %s116
      %s119 = sphi 0, %s118
      %s133 = sphi 0, %s119
      %s137 = sphi 0, %s137
      %s139 = sphi 0, %s137
      %s140 = sphi 0, %s139
      %s154 = sphi 0, %s140
      %s160 = sphi 0, %s162
      %s163 = sphi 0, %s160
      %s164 = sphi 0, %s163
      %s180 = sphi 0, %s164
    $region4: #{tpu_custom_call.1} parent=1 // loop_header_branch
      %22 = sbr.rel (%p20) target = $region8
    $region5: #{tpu_custom_call.1} parent=1 // loop_body
      %s24 = ssub.s32 %s19, 1
      %s25 = ssub.s32 %s19, 2
      %s26 = sadd.s32 %s19, 1
      %s27 = ssub.s32 %s19, %s26
      %p28 = scmp.eq.s32.totalorder %s27, 0
      %s30 = sadd.s32 %s29, 1
      %s31 = scalar_select %p28, %s29, %s30
      %p34 = pneg %p28
      %p35 = scmp.eq.s32.totalorder %s19, 1
      %p36 = por %p34, %p35
      %p37 = scmp.ne.s32.totalorder %s29, %s32
      %p38 = scmp.eq.s32.totalorder %s19, 0
      %p39 = por %p37, %p38
      %p40 = scmp.ne.s32.totalorder %s29, %s32
      %p41 = scmp.eq.s32.totalorder %s24, 1
      %p42 = por %p40, %p41
      %p43 = scmp.ne.s32.totalorder %s32, %s33
      %p44 = scmp.eq.s32.totalorder %s24, 0
      %p45 = por %p43, %p44
      %p46 = scmp.ne.s32.totalorder %s32, %s33
      %p47 = scmp.eq.s32.totalorder %s25, 1
      %p48 = por %p46, %p47
      %p50 = scmp.ne.s32.totalorder %s33, %s49
      %p51 = scmp.eq.s32.totalorder %s25, 0
      %p52 = por %p50, %p51
      %s54 = sadd.s32 %s53, 1
      %p57 = scmp.eq.s32.totalorder %s19, 1
      %p58 = scmp.ne.s32.totalorder %s53, %s55
      %p59 = scmp.eq.s32.totalorder %s19, 0
      %p60 = por %p58, %p59
      %p61 = scmp.ne.s32.totalorder %s53, %s55
      %p62 = scmp.eq.s32.totalorder %s24, 1
      %p63 = por %p61, %p62
      %p64 = scmp.ne.s32.totalorder %s55, %s56
      %p65 = scmp.eq.s32.totalorder %s24, 0
      %p66 = por %p64, %p65
      %p67 = scmp.ne.s32.totalorder %s55, %s56
      %p68 = scmp.eq.s32.totalorder %s25, 1
      %p69 = por %p67, %p68
      %p71 = scmp.ne.s32.totalorder %s56, %s70
      %p72 = scmp.eq.s32.totalorder %s25, 0
      %p73 = por %p71, %p72
      %s75 = sadd.s32 %s74, 1
      %p78 = scmp.eq.s32.totalorder %s19, 1
      %p79 = scmp.ne.s32.totalorder %s74, %s76
      %p80 = scmp.eq.s32.totalorder %s19, 0
      %p81 = por %p79, %p80
      %p82 = scmp.ne.s32.totalorder %s74, %s76
      %p83 = scmp.eq.s32.totalorder %s24, 1
      %p84 = por %p82, %p83
      %p85 = scmp.ne.s32.totalorder %s76, %s77
      %p86 = scmp.eq.s32.totalorder %s24, 0
      %p87 = por %p85, %p86
      %p88 = scmp.ne.s32.totalorder %s76, %s77
      %p89 = scmp.eq.s32.totalorder %s25, 1
      %p90 = por %p88, %p89
      %p92 = scmp.ne.s32.totalorder %s77, %s91
      %p93 = scmp.eq.s32.totalorder %s25, 0
      %p94 = por %p92, %p93
      %s96 = sadd.s32 %s95, 1
      %p99 = scmp.eq.s32.totalorder %s19, 1
      %p100 = scmp.ne.s32.totalorder %s95, %s97
      %p101 = scmp.eq.s32.totalorder %s19, 0
      %p102 = por %p100, %p101
      %p103 = scmp.ne.s32.totalorder %s95, %s97
      %p104 = scmp.eq.s32.totalorder %s24, 1
      %p105 = por %p103, %p104
      %p106 = scmp.ne.s32.totalorder %s97, %s98
      %p107 = scmp.eq.s32.totalorder %s24, 0
      %p108 = por %p106, %p107
      %p109 = scmp.ne.s32.totalorder %s97, %s98
      %p110 = scmp.eq.s32.totalorder %s25, 1
      %p111 = por %p109, %p110
      %p113 = scmp.ne.s32.totalorder %s98, %s112
      %p114 = scmp.eq.s32.totalorder %s25, 0
      %p115 = por %p113, %p114
      %s117 = sadd.s32 %s116, 1
      %p120 = scmp.eq.s32.totalorder %s19, 1
      %p121 = scmp.ne.s32.totalorder %s116, %s118
      %p122 = scmp.eq.s32.totalorder %s19, 0
      %p123 = por %p121, %p122
      %p124 = scmp.ne.s32.totalorder %s116, %s118
      %p125 = scmp.eq.s32.totalorder %s24, 1
      %p126 = por %p124, %p125
      %p127 = scmp.ne.s32.totalorder %s118, %s119
      %p128 = scmp.eq.s32.totalorder %s24, 0
      %p129 = por %p127, %p128
      %p130 = scmp.ne.s32.totalorder %s118, %s119
      %p131 = scmp.eq.s32.totalorder %s25, 1
      %p132 = por %p130, %p131
      %p134 = scmp.ne.s32.totalorder %s119, %s133
      %p135 = scmp.eq.s32.totalorder %s25, 0
      %p136 = por %p134, %p135
      %s138 = sadd.s32 %s137, 1
      %p141 = scmp.eq.s32.totalorder %s19, 1
      %p142 = scmp.ne.s32.totalorder %s137, %s139
      %p143 = scmp.eq.s32.totalorder %s19, 0
      %p144 = por %p142, %p143
      %p145 = scmp.ne.s32.totalorder %s137, %s139
      %p146 = scmp.eq.s32.totalorder %s24, 1
      %p147 = por %p145, %p146
      %p148 = scmp.ne.s32.totalorder %s139, %s140
      %p149 = scmp.eq.s32.totalorder %s24, 0
      %p150 = por %p148, %p149
      %p151 = scmp.ne.s32.totalorder %s139, %s140
      %p152 = scmp.eq.s32.totalorder %s25, 1
      %p153 = por %p151, %p152
      %p155 = scmp.ne.s32.totalorder %s140, %s154
      %p156 = scmp.eq.s32.totalorder %s25, 0
      %p157 = por %p155, %p156
      %s158 = ssub.s32 %s19, %s26
      %p159 = scmp.eq.s32.totalorder %s158, 0
      %s161 = sadd.s32 %s160, 1
      %s162 = scalar_select %p159, %s160, %s161
      %p165 = pneg %p159
      %p166 = scmp.eq.s32.totalorder %s19, 1
      %p167 = por %p165, %p166
      %p168 = scmp.ne.s32.totalorder %s160, %s163
      %p169 = scmp.eq.s32.totalorder %s19, 0
      %p170 = por %p168, %p169
      %p171 = scmp.ne.s32.totalorder %s160, %s163
      %p172 = scmp.eq.s32.totalorder %s24, 1
      %p173 = por %p171, %p172
      %p174 = scmp.ne.s32.totalorder %s163, %s164
      %p175 = scmp.eq.s32.totalorder %s24, 0
      %p176 = por %p174, %p175
      %p177 = scmp.ne.s32.totalorder %s163, %s164
      %p178 = scmp.eq.s32.totalorder %s25, 1
      %p179 = por %p177, %p178
      %p181 = scmp.ne.s32.totalorder %s164, %s180
      %p182 = scmp.eq.s32.totalorder %s25, 0
      %p183 = por %p181, %p182
      %p184 = scmp.le.s32.totalorder 1, %s19
      %p185 = scmp.lt.s32.totalorder %s19, 3
      %p186 = pnand %p184, %p185
      %p187 = pneg %p186
      // Predicated region
      $region9: #{tpu_custom_call.1} parent=5 // pred_check
        _
      $region10: #{tpu_custom_call.1} parent=5 // pred_check_branch
        %189 = sbr.rel (%p186) target = $region12
      $region11: #{tpu_custom_call.1} parent=5 // pred_region
        %s190 = ssub.s32 %s19, 1
        // Predicated region
        $region13: #{tpu_custom_call.1} parent=11 // pred_check
          %p191 = pneg %p66
        $region14: #{tpu_custom_call.1} parent=11 // pred_check_branch
          %193 = sbr.rel (%p191) target = $region16
        $region15: #{tpu_custom_call.1} parent=11 // pred_region
          %s195 = ssub.s32 128, 128
          %196 = vsyncadd [#allocation6], %s195
          %s198 = sshll.u32 [#allocation5], 4
          %s199 = int_to_ptr.vmem [resolvable:$true] %s198
          %201 = dma.hbm_to_vmem [thread:$0]  %s1, 128, %s199, [#allocation6]
        $region16: #{tpu_custom_call.1} parent=11 // pred_fallthru
          _
        // Predicated region
        $region17: #{tpu_custom_call.1} parent=11 // pred_check
          %p202 = pneg %p87
        $region18: #{tpu_custom_call.1} parent=11 // pred_check_branch
          %204 = sbr.rel (%p202) target = $region20
        $region19: #{tpu_custom_call.1} parent=11 // pred_region
          _
        $region20: #{tpu_custom_call.1} parent=11 // pred_fallthru
          _
        // Predicated region
        $region21: #{tpu_custom_call.1} parent=11 // pred_check
          %p205 = pneg %p108
        $region22: #{tpu_custom_call.1} parent=11 // pred_check_branch
          %207 = sbr.rel (%p205) target = $region24
        $region23: #{tpu_custom_call.1} parent=11 // pred_region
          %s209 = ssub.s32 128, 128
          %210 = vsyncadd [#allocation6], %s209
          %s212 = sshll.u32 [#allocation7], 4
          %s213 = int_to_ptr.vmem [resolvable:$true] %s212
          %215 = dma.hbm_to_vmem [thread:$0]  %s3, 128, %s213, [#allocation6]
        $region24: #{tpu_custom_call.1} parent=11 // pred_fallthru
          _
        // Predicated region
        $region25: #{tpu_custom_call.1} parent=11 // pred_check
          %p216 = pneg %p129
        $region26: #{tpu_custom_call.1} parent=11 // pred_check_branch
          %218 = sbr.rel (%p216) target = $region28
        $region27: #{tpu_custom_call.1} parent=11 // pred_region
          _
        $region28: #{tpu_custom_call.1} parent=11 // pred_fallthru
          _
        // Predicated region
        $region29: #{tpu_custom_call.1} parent=11 // pred_check
          %p219 = pneg %p150
        $region30: #{tpu_custom_call.1} parent=11 // pred_check_branch
          %221 = sbr.rel (%p219) target = $region32
        $region31: #{tpu_custom_call.1} parent=11 // pred_region
          _
        $region32: #{tpu_custom_call.1} parent=11 // pred_fallthru
          _
      $region12: #{tpu_custom_call.1} parent=5 // pred_fallthru
        _
      %p222 = scmp.lt.s32.totalorder %s19, 2
      // Predicated region
      $region33: #{tpu_custom_call.1} parent=5 // pred_check
        %p223 = pneg %p222
      $region34: #{tpu_custom_call.1} parent=5 // pred_check_branch
        %225 = sbr.rel (%p223) target = $region36
      $region35: #{tpu_custom_call.1} parent=5 // pred_region
        // Predicated region
        $region37: #{tpu_custom_call.1} parent=35 // pred_check
          %p226 = pneg %p39
        $region38: #{tpu_custom_call.1} parent=35 // pred_check_branch
          %228 = sbr.rel (%p226) target = $region40
        $region39: #{tpu_custom_call.1} parent=35 // pred_region
          %s229 = sand.u32 %s29, 1
          %s230 = scalar_lea.sflag [#allocation3], %s229
          %s231 = sand.u32 %s29, 1
          %s232 = smul.addr %s231, 16
          %s233 = scalar_lea.vmem [#allocation2], %s232
          %s234 = smul.u32 2, %s19
          %s236 = ssub.s32 256, 256
          %237 = vsyncadd %s230, %s236
          %s238 = smul.addr %s234, 128
          %s239 = scalar_lea.hbm %s0, %s238
          %s241 = sshll.u32 %s233, 4
          %s242 = int_to_ptr.vmem [resolvable:$true] %s241
          %244 = dma.hbm_to_vmem [thread:$0]  %s239, 256, %s242, %s230
        $region40: #{tpu_custom_call.1} parent=35 // pred_fallthru
          _
      $region36: #{tpu_custom_call.1} parent=5 // pred_fallthru
        _
      %p245 = scmp.le.s32.totalorder 1, %s19
      %p246 = scmp.lt.s32.totalorder %s19, 3
      %p247 = pnand %p245, %p246
      %p248 = pneg %p247
      // Predicated region
      $region41: #{tpu_custom_call.1} parent=5 // pred_check
        _
      $region42: #{tpu_custom_call.1} parent=5 // pred_check_branch
        %250 = sbr.rel (%p247) target = $region44
      $region43: #{tpu_custom_call.1} parent=5 // pred_region
        %s251 = ssub.s32 %s19, 1
        %s252 = sand.u32 %s32, 1
        %s253 = scalar_lea.sflag [#allocation3], %s252
        %s254 = sand.u32 %s32, 1
        %s255 = smul.addr %s254, 16
        %s256 = scalar_lea.vmem [#allocation2], %s255
        // Predicated region
        $region45: #{tpu_custom_call.1} parent=43 // pred_check
          %p257 = pneg %p45
        $region46: #{tpu_custom_call.1} parent=43 // pred_check_branch
          %259 = sbr.rel (%p257) target = $region48
        $region47: #{tpu_custom_call.1} parent=43 // pred_region
          %260 = dma.done %s253, 256
        $region48: #{tpu_custom_call.1} parent=43 // pred_fallthru
          _
        // Predicated region
        $region49: #{tpu_custom_call.1} parent=43 // pred_check
          %p261 = pneg %p66
        $region50: #{tpu_custom_call.1} parent=43 // pred_check_branch
          %263 = sbr.rel (%p261) target = $region52
        $region51: #{tpu_custom_call.1} parent=43 // pred_region
          %264 = dma.done [#allocation6], 128
        $region52: #{tpu_custom_call.1} parent=43 // pred_fallthru
          _
        // Predicated region
        $region53: #{tpu_custom_call.1} parent=43 // pred_check
          %p265 = pneg %p108
        $region54: #{tpu_custom_call.1} parent=43 // pred_check_branch
          %267 = sbr.rel (%p265) target = $region56
        $region55: #{tpu_custom_call.1} parent=43 // pred_region
          %268 = dma.done [#allocation6], 128
        $region56: #{tpu_custom_call.1} parent=43 // pred_fallthru
          _
        %s269 = sand.u32 %s32, 1
        %s270 = scalar_lea.sflag [#allocation3], %s269
        %s271 = sand.u32 %s32, 1
        %s272 = smul.addr %s271, 16
        %s273 = scalar_lea.vmem [#allocation2], %s272
        %p274 = pneg %p45
        %p275 = pneg %p42
        %p276 = pneg %p66
        %p277 = pneg %p63
        %p278 = pneg %p87
        %p279 = pneg %p84
        %p280 = pneg %p108
        %p281 = pneg %p105
        %p282 = pneg %p129
        %p283 = pneg %p126
        %p284 = pneg %p150
        %p285 = pneg %p147
        %p286 = pneg %p176
        %p287 = pneg %p173
        %s288 = sand.u32 %s163, 1
        %s289 = scalar_lea.sflag [#allocation4], %s288
        %s290 = sand.u32 %s163, 1
        %s291 = smul.addr %s290, 16
        %s292 = scalar_lea.vmem [#allocation8], %s291
        %s293 = smul.u32 2, %s24
        %s294 = smul.u32 2, %s24
        %v295 = vld [vmem:[%s256] sm:$0xff]
        %v296 = vld [vmem:[%s256 + $0x8] sm:$0xff]
        %v297 = vld [vmem:[#allocation5] sm:$0xff]
        %v298 = vld [vmem:[%s2] sm:$0xff]
        %300 = vset.pattern.permute.xlu0 0
        %301 = vperm.xlu0 %300, %v298
        %v302 = vpop.permute.xlu0 %301
        %vm304 = vcmask 64512
        %v306 = vsel %vm304, %v297, 0
        %308 = vmatprep.subr.mxu0 %v296
        %309 = vmatpush1.msra.mxu0 %v295
        %310 = vmatprep.subr.mxu0 0.0
        %311 = vmatpush1.msra.mxu0 0.0
        %312 = vmatprep.subr.mxu0 0.0
        %313 = vmatpush1.msra.mxu0 0.0
        %314 = vmatprep.subr.mxu0 0.0
        %315 = vmatpush1.msra.mxu0 0.0
        %316 = vmatprep.subr.mxu0 0.0
        %317 = vmatpush1.msra.mxu0 0.0
        %318 = vmatprep.subr.mxu0 0.0
        %319 = vmatpush1.msra.mxu0 0.0
        %320 = vmatprep.subr.mxu0 0.0
        %321 = vmatpush1.msra.mxu0 0.0
        %322 = vmatprep.subr.mxu0 0.0
        %323 = vmatpush1.msra.mxu0 0.0
        %324 = vmatprep.subr.mxu0 0.0
        %325 = vmatpush1.msra.mxu0 0.0
        %326 = vmatprep.subr.mxu0 0.0
        %327 = vmatpush1.msra.mxu0 0.0
        %328 = vmatprep.subr.mxu0 0.0
        %329 = vmatpush1.msra.mxu0 0.0
        %330 = vmatprep.subr.mxu0 0.0
        %331 = vmatpush1.msra.mxu0 0.0
        %332 = vmatprep.subr.mxu0 0.0
        %333 = vmatpush1.msra.mxu0 0.0
        %334 = vmatprep.subr.mxu0 0.0
        %335 = vmatpush1.msra.mxu0 0.0
        %336 = vmatprep.subr.mxu0 0.0
        %337 = vmatpush1.msra.mxu0 0.0
        %338 = vmatprep.subr.mxu0 0.0
        %339 = vmatpush1.msra.mxu0 0.0
        %340 = vmatprep.subr.mxu0 0.0
        %341 = vmatpush1.msra.mxu0 0.0
        %342 = vmatprep.subr.mxu0 0.0
        %343 = vmatpush1.msra.mxu0 0.0
        %344 = vmatprep.subr.mxu0 0.0
        %345 = vmatpush1.msra.mxu0 0.0
        %346 = vmatprep.subr.mxu0 0.0
        %347 = vmatpush1.msra.mxu0 0.0
        %348 = vmatprep.subr.mxu0 0.0
        %349 = vmatpush1.msra.mxu0 0.0
        %350 = vmatprep.subr.mxu0 0.0
        %351 = vmatpush1.msra.mxu0 0.0
        %352 = vmatprep.subr.mxu0 0.0
        %353 = vmatpush1.msra.mxu0 0.0
        %354 = vmatprep.subr.mxu0 0.0
        %355 = vmatpush1.msra.mxu0 0.0
        %356 = vmatprep.subr.mxu0 0.0
        %357 = vmatpush1.msra.mxu0 0.0
        %358 = vmatprep.subr.mxu0 0.0
        %359 = vmatpush1.msra.mxu0 0.0
        %360 = vmatprep.subr.mxu0 0.0
        %361 = vmatpush1.msra.mxu0 0.0
        %362 = vmatprep.subr.mxu0 0.0
        %363 = vmatpush1.msra.mxu0 0.0
        %364 = vmatprep.subr.mxu0 0.0
        %365 = vmatpush1.msra.mxu0 0.0
        %366 = vmatprep.subr.mxu0 0.0
        %367 = vmatpush1.msra.mxu0 0.0
        %368 = vmatprep.subr.mxu0 0.0
        %369 = vmatpush1.msra.mxu0 0.0
        %370 = vmatprep.subr.mxu0 0.0
        %371 = vmatpush1.msra.mxu0 0.0
        %372 = vmatprep.mubr.f32.mxu0 0.0
        %373 = vmatmul.mubr.f32.gmra.mrb[0].mxu0 %v306
        %v374 = vpop.f32.mrb[0].mxu0
        %v375 = vadd.f32 %v302, %v374
        %v376 = vpop.f32.mrb[0].mxu0
        %v377 = vadd.f32 %v302, %v376
        %378 = vdwg.mxu0
        %v379 = vadd.f32 %v375, 3.0
        %v380 = vadd.f32 %v377, 3.0
        %v381 = vmax.f32 %v379, 0.0
        %v382 = vmax.f32 %v380, 0.0
        %v383 = vmin.f32 %v381, 6.0
        %v384 = vmin.f32 %v382, 6.0
        %v385 = vmul.f32 %v375, %v383
        %v386 = vmul.f32 %v377, %v384
        %v387 = vmul.f32 %v385, 0.16666667
        %v388 = vmul.f32 %v386, 0.16666667
        %v389 = vld [vmem:[%s5] ss:$8 sm:$0x3]
        %390 = vrot.lane.b32.xlu0 %v387, 17
        %v391 = vpop.permute.xlu0 %390
        %392 = vrot.lane.b32.xlu0 %v388, 17
        %v393 = vpop.permute.xlu0 %392
        %v394 = vlaneseq
        %v395 = vand.u32 %v394, 127
        %vm396 = vcmp.lt.s32.totalorder %v395, 17
        %v397 = vsel %vm396, %v391, %v393
        %v398 = vsel %vm396, %v393, %v391
        %v400 = vlaneseq
        %v401 = vshrl.u32 %v400, 7
        %v402 = vsub.s32 0, %v401
        %v403 = vrot.slane %v389, %v402
        %v404 = vlaneseq
        %v405 = vshrl.u32 %v404, 7
        %v406 = vsub.s32 1, %v405
        %v407 = vrot.slane %v389, %v406
        %v410 = vmul.f32 %v403, %v398
        %v411 = vmul.f32 %v407, %v397
        %s412 = scalar_lea.vmem %s5, 1
        %v413 = vld [vmem:[%s412] ss:$8 sm:$0x3]
        %414 = vrot.lane.b32.xlu0 %v387, 16
        %v415 = vpop.permute.xlu0 %414
        %416 = vrot.lane.b32.xlu0 %v388, 16
        %v417 = vpop.permute.xlu0 %416
        %vm418 = vcmp.lt.s32.totalorder %v395, 16
        %v419 = vsel %vm418, %v415, %v417
        %v420 = vsel %vm418, %v417, %v415
        %v422 = vlaneseq
        %v423 = vshrl.u32 %v422, 7
        %v424 = vsub.s32 0, %v423
        %v425 = vrot.slane %v413, %v424
        %v426 = vlaneseq
        %v427 = vshrl.u32 %v426, 7
        %v428 = vsub.s32 1, %v427
        %v429 = vrot.slane %v413, %v428
        %v432 = vmul.f32 %v425, %v420
        %v433 = vmul.f32 %v429, %v419
        %s434 = scalar_lea.vmem %s5, 2
        %v435 = vld [vmem:[%s434] ss:$8 sm:$0x3]
        %436 = vrot.lane.b32.xlu0 %v387, 15
        %v437 = vpop.permute.xlu0 %436
        %438 = vrot.lane.b32.xlu0 %v388, 15
        %v439 = vpop.permute.xlu0 %438
        %vm440 = vcmp.lt.s32.totalorder %v395, 15
        %v441 = vsel %vm440, %v437, %v439
        %v442 = vsel %vm440, %v439, %v437
        %v444 = vlaneseq
        %v445 = vshrl.u32 %v444, 7
        %v446 = vsub.s32 0, %v445
        %v447 = vrot.slane %v435, %v446
        %v448 = vlaneseq
        %v449 = vshrl.u32 %v448, 7
        %v450 = vsub.s32 1, %v449
        %v451 = vrot.slane %v435, %v450
        %v454 = vmul.f32 %v447, %v442
        %v455 = vmul.f32 %v451, %v441
        %s456 = scalar_lea.vmem %s5, 3
        %v457 = vld [vmem:[%s456] ss:$8 sm:$0x3]
        %458 = vrot.lane.b32.xlu0 %v387, 1
        %v459 = vpop.permute.xlu0 %458
        %460 = vrot.lane.b32.xlu0 %v388, 1
        %v461 = vpop.permute.xlu0 %460
        %vm462 = vcmp.lt.s32.totalorder %v395, 1
        %v463 = vsel %vm462, %v459, %v461
        %v464 = vsel %vm462, %v461, %v459
        %v466 = vlaneseq
        %v467 = vshrl.u32 %v466, 7
        %v468 = vsub.s32 0, %v467
        %v469 = vrot.slane %v457, %v468
        %v470 = vlaneseq
        %v471 = vshrl.u32 %v470, 7
        %v472 = vsub.s32 1, %v471
        %v473 = vrot.slane %v457, %v472
        %v476 = vmul.f32 %v469, %v464
        %v477 = vmul.f32 %v473, %v463
        %s478 = scalar_lea.vmem %s5, 4
        %v479 = vld [vmem:[%s478] ss:$8 sm:$0x3]
        %v481 = vlaneseq
        %v482 = vshrl.u32 %v481, 7
        %v483 = vsub.s32 0, %v482
        %v484 = vrot.slane %v479, %v483
        %v485 = vlaneseq
        %v486 = vshrl.u32 %v485, 7
        %v487 = vsub.s32 1, %v486
        %v488 = vrot.slane %v479, %v487
        %v491 = vmul.f32 %v484, %v387
        %v492 = vmul.f32 %v488, %v388
        %s493 = scalar_lea.vmem %s5, 5
        %v494 = vld [vmem:[%s493] ss:$8 sm:$0x3]
        %495 = vrot.lane.b32.xlu0 %v387, 127
        %v496 = vpop.permute.xlu0 %495
        %497 = vrot.lane.b32.xlu0 %v388, 127
        %v498 = vpop.permute.xlu0 %497
        %vm499 = vcmp.lt.s32.totalorder %v395, 127
        %v500 = vsel %vm499, %v496, %v498
        %v501 = vsel %vm499, %v498, %v496
        %v503 = vlaneseq
        %v504 = vshrl.u32 %v503, 7
        %v505 = vsub.s32 0, %v504
        %v506 = vrot.slane %v494, %v505
        %v507 = vlaneseq
        %v508 = vshrl.u32 %v507, 7
        %v509 = vsub.s32 1, %v508
        %v510 = vrot.slane %v494, %v509
        %v513 = vmul.f32 %v506, %v500
        %v514 = vmul.f32 %v510, %v501
        %s515 = scalar_lea.vmem %s5, 6
        %v516 = vld [vmem:[%s515] ss:$8 sm:$0x3]
        %517 = vrot.lane.b32.xlu0 %v387, 113
        %v518 = vpop.permute.xlu0 %517
        %519 = vrot.lane.b32.xlu0 %v388, 113
        %v520 = vpop.permute.xlu0 %519
        %vm521 = vcmp.lt.s32.totalorder %v395, 113
        %v522 = vsel %vm521, %v518, %v520
        %v523 = vsel %vm521, %v520, %v518
        %v525 = vlaneseq
        %v526 = vshrl.u32 %v525, 7
        %v527 = vsub.s32 0, %v526
        %v528 = vrot.slane %v516, %v527
        %v529 = vlaneseq
        %v530 = vshrl.u32 %v529, 7
        %v531 = vsub.s32 1, %v530
        %v532 = vrot.slane %v516, %v531
        %v535 = vmul.f32 %v528, %v522
        %v536 = vmul.f32 %v532, %v523
        %s537 = scalar_lea.vmem %s5, 7
        %v538 = vld [vmem:[%s537] ss:$8 sm:$0x3]
        %539 = vrot.lane.b32.xlu0 %v387, 112
        %v540 = vpop.permute.xlu0 %539
        %541 = vrot.lane.b32.xlu0 %v388, 112
        %v542 = vpop.permute.xlu0 %541
        %vm543 = vcmp.lt.s32.totalorder %v395, 112
        %v544 = vsel %vm543, %v540, %v542
        %v545 = vsel %vm543, %v542, %v540
        %v547 = vlaneseq
        %v548 = vshrl.u32 %v547, 7
        %v549 = vsub.s32 0, %v548
        %v550 = vrot.slane %v538, %v549
        %v551 = vlaneseq
        %v552 = vshrl.u32 %v551, 7
        %v553 = vsub.s32 1, %v552
        %v554 = vrot.slane %v538, %v553
        %v557 = vmul.f32 %v550, %v544
        %v558 = vmul.f32 %v554, %v545
        %s559 = scalar_lea.vmem %s5, 16
        %v560 = vld [vmem:[%s559] ss:$8 sm:$0x3]
        %561 = vrot.lane.b32.xlu0 %v387, 111
        %v562 = vpop.permute.xlu0 %561
        %563 = vrot.lane.b32.xlu0 %v388, 111
        %v564 = vpop.permute.xlu0 %563
        %vm565 = vcmp.lt.s32.totalorder %v395, 111
        %v566 = vsel %vm565, %v562, %v564
        %v567 = vsel %vm565, %v564, %v562
        %v569 = vlaneseq
        %v570 = vshrl.u32 %v569, 7
        %v571 = vsub.s32 0, %v570
        %v572 = vrot.slane %v560, %v571
        %v573 = vlaneseq
        %v574 = vshrl.u32 %v573, 7
        %v575 = vsub.s32 1, %v574
        %v576 = vrot.slane %v560, %v575
        %v579 = vmul.f32 %v572, %v566
        %v580 = vmul.f32 %v576, %v567
        %v581 = vld [vmem:[#allocation7] sm:$0xff]
        %v582 = vld [vmem:[%s4] sm:$0xff]
        %584 = vset.pattern.permute.xlu0 0
        %585 = vperm.xlu0 %584, %v582
        %v586 = vpop.permute.xlu0 %585
        %vm588 = vcmask 588800
        %v590 = vsel %vm588, %v581, 0
        %592 = vmatprep.subr.mxu0 %v411
        %593 = vmatpush1.msra.mxu0 %v410
        %594 = vmatprep.subr.mxu0 %v433
        %595 = vmatpush1.msra.mxu0 %v432
        %596 = vmatprep.subr.mxu0 %v455
        %597 = vmatpush1.msra.mxu0 %v454
        %598 = vmatprep.subr.mxu0 %v477
        %599 = vmatpush1.msra.mxu0 %v476
        %600 = vmatprep.subr.mxu0 %v492
        %601 = vmatpush1.msra.mxu0 %v491
        %602 = vmatprep.subr.mxu0 %v514
        %603 = vmatpush1.msra.mxu0 %v513
        %604 = vmatprep.subr.mxu0 %v536
        %605 = vmatpush1.msra.mxu0 %v535
        %606 = vmatprep.subr.mxu0 %v558
        %607 = vmatpush1.msra.mxu0 %v557
        %608 = vmatprep.subr.mxu0 %v580
        %609 = vmatpush1.msra.mxu0 %v579
        %610 = vmatprep.subr.mxu0 0.0
        %611 = vmatpush1.msra.mxu0 0.0
        %612 = vmatprep.subr.mxu0 0.0
        %613 = vmatpush1.msra.mxu0 0.0
        %614 = vmatprep.subr.mxu0 0.0
        %615 = vmatpush1.msra.mxu0 0.0
        %616 = vmatprep.subr.mxu0 0.0
        %617 = vmatpush1.msra.mxu0 0.0
        %618 = vmatprep.subr.mxu0 0.0
        %619 = vmatpush1.msra.mxu0 0.0
        %620 = vmatprep.subr.mxu0 0.0
        %621 = vmatpush1.msra.mxu0 0.0
        %622 = vmatprep.subr.mxu0 0.0
        %623 = vmatpush1.msra.mxu0 0.0
        %624 = vmatprep.subr.mxu0 0.0
        %625 = vmatpush1.msra.mxu0 0.0
        %626 = vmatprep.subr.mxu0 0.0
        %627 = vmatpush1.msra.mxu0 0.0
        %628 = vmatprep.subr.mxu0 0.0
        %629 = vmatpush1.msra.mxu0 0.0
        %630 = vmatprep.subr.mxu0 0.0
        %631 = vmatpush1.msra.mxu0 0.0
        %632 = vmatprep.subr.mxu0 0.0
        %633 = vmatpush1.msra.mxu0 0.0
        %634 = vmatprep.subr.mxu0 0.0
        %635 = vmatpush1.msra.mxu0 0.0
        %636 = vmatprep.subr.mxu0 0.0
        %637 = vmatpush1.msra.mxu0 0.0
        %638 = vmatprep.subr.mxu0 0.0
        %639 = vmatpush1.msra.mxu0 0.0
        %640 = vmatprep.subr.mxu0 0.0
        %641 = vmatpush1.msra.mxu0 0.0
        %642 = vmatprep.subr.mxu0 0.0
        %643 = vmatpush1.msra.mxu0 0.0
        %644 = vmatprep.subr.mxu0 0.0
        %645 = vmatpush1.msra.mxu0 0.0
        %646 = vmatprep.subr.mxu0 0.0
        %647 = vmatpush1.msra.mxu0 0.0
        %648 = vmatprep.subr.mxu0 0.0
        %649 = vmatpush1.msra.mxu0 0.0
        %650 = vmatprep.subr.mxu0 0.0
        %651 = vmatpush1.msra.mxu0 0.0
        %652 = vmatprep.subr.mxu0 0.0
        %653 = vmatpush1.msra.mxu0 0.0
        %654 = vmatprep.subr.mxu0 0.0
        %655 = vmatpush1.msra.mxu0 0.0
        %656 = vmatprep.mubr.f32.mxu0 0.0
        %657 = vmatmul.mubr.f32.gmra.mrb[0].mxu0 %v590
        %v658 = vpop.f32.mrb[0].mxu0
        %v659 = vadd.f32 %v586, %v658
        %v660 = vpop.f32.mrb[0].mxu0
        %v661 = vadd.f32 %v586, %v660
        %662 = vdwg.mxu0
        %v663 = vadd.f32 %v659, 3.0
        %v664 = vadd.f32 %v661, 3.0
        %v665 = vmax.f32 %v663, 0.0
        %v666 = vmax.f32 %v664, 0.0
        %v667 = vmin.f32 %v665, 6.0
        %v668 = vmin.f32 %v666, 6.0
        %v669 = vmul.f32 %v659, %v667
        %v670 = vmul.f32 %v661, %v668
        %v671 = vmul.f32 %v669, 0.16666667
        %v672 = vmul.f32 %v670, 0.16666667
        %v673 = vadd.f32 %v671, %v295
        %v674 = vadd.f32 %v672, %v296
        %675 = vst [vmem:[%s292] sm:$0xff] %v673
        %676 = vst [vmem:[%s292 + $0x8] sm:$0xff] %v674
        %s677 = sand.u32 %s163, 1
        %s678 = scalar_lea.sflag [#allocation4], %s677
        %s679 = sand.u32 %s163, 1
        %s680 = smul.addr %s679, 16
        %s681 = scalar_lea.vmem [#allocation8], %s680
        // Predicated region
        $region57: #{tpu_custom_call.1} parent=43 // pred_check
          %p682 = pneg %p173
        $region58: #{tpu_custom_call.1} parent=43 // pred_check_branch
          %684 = sbr.rel (%p682) target = $region60
        $region59: #{tpu_custom_call.1} parent=43 // pred_region
          %s685 = smul.u32 2, %s24
          %s687 = ssub.s32 256, 256
          %688 = vsyncadd %s678, %s687
          %s689 = smul.addr %s685, 128
          %s690 = scalar_lea.hbm %s6, %s689
          %s692 = sshll.u32 %s681, 4
          %s693 = int_to_ptr.vmem [resolvable:$true] %s692
          %695 = dma.vmem_to_hbm [thread:$0]  %s693, 256, %s690, %s678
        $region60: #{tpu_custom_call.1} parent=43 // pred_fallthru
          _
      $region44: #{tpu_custom_call.1} parent=5 // pred_fallthru
        _
      %p696 = scmp.le.s32.totalorder 2, %s19
      // Predicated region
      $region61: #{tpu_custom_call.1} parent=5 // pred_check
        %p697 = pneg %p696
      $region62: #{tpu_custom_call.1} parent=5 // pred_check_branch
        %699 = sbr.rel (%p697) target = $region64
      $region63: #{tpu_custom_call.1} parent=5 // pred_region
        %s700 = ssub.s32 %s19, 2
        // Predicated region
        $region65: #{tpu_custom_call.1} parent=63 // pred_check
          %p701 = pneg %p179
        $region66: #{tpu_custom_call.1} parent=63 // pred_check_branch
          %703 = sbr.rel (%p701) target = $region68
        $region67: #{tpu_custom_call.1} parent=63 // pred_region
          %s704 = sand.u32 %s164, 1
          %s705 = scalar_lea.sflag [#allocation4], %s704
          %s706 = sand.u32 %s164, 1
          %s707 = smul.addr %s706, 16
          %s708 = scalar_lea.vmem [#allocation8], %s707
          %709 = dma.done %s705, 256
        $region68: #{tpu_custom_call.1} parent=63 // pred_fallthru
          _
      $region64: #{tpu_custom_call.1} parent=5 // pred_fallthru
        _
    $region6: #{tpu_custom_call.1} parent=1 // loop_footer
      %s23 = sadd.s32 1, %s19
    $region7: #{tpu_custom_call.1} parent=1 // loop_footer_branch
      %18 = sbr.rel target = $region3
    $region8: #{tpu_custom_call.1} parent=1 // loop_exit
      _
    %710 = vsyncpa [#allocation3], 1
    %s711 = scalar_lea.sflag [#allocation3], 1
    %712 = vsyncpa %s711, 1
    %713 = vsyncpa [#allocation6], 1
    %714 = vsyncpa [#allocation4], 1
    %s715 = scalar_lea.sflag [#allocation4], 1
    %716 = vsyncpa %s715, 1

</llo_original>
